<compile_context>
chip_gen: v7x
topology: tpu7x:2x2x1
jax: 0.10.0
libtpu: 0.0.40
codegen_flags: <defaults>
</compile_context>

<pallas_src>
import functools

import jax
import jax.numpy as jnp
from jax import lax
from jax.experimental import pallas as pl
from jax.experimental.pallas import tpu as pltpu


# -----------------------------------------------------------------------------
# Tiled matmul (bias-free): y = x @ w, f32 accumulation, K-axis reduction grid.
# -----------------------------------------------------------------------------
def _matmul_kernel(x_ref, w_ref, o_ref, acc_ref):
    @pl.when(pl.program_id(2) == 0)
    def _init():
        acc_ref[...] = jnp.zeros_like(acc_ref)

    acc_ref[...] += jnp.dot(x_ref[...], w_ref[...],
                            preferred_element_type=jnp.float32)

    @pl.when(pl.program_id(2) == pl.num_programs(2) - 1)
    def _finalize():
        o_ref[...] = acc_ref[...].astype(o_ref.dtype)


def _pick_tile(dim, pref):
    """Largest tile <= pref that divides dim; falls back to the full dim."""
    if dim <= pref:
        return dim
    if dim % pref == 0:
        return pref
    # Look for a smaller divisor that keeps the (8,128) tiling friendly.
    for t in range(pref, 0, -1):
        if dim % t == 0:
            return t
    return dim


def _matmul(x, w, *, tm=256, tn=256, tk=512):
    M, K = x.shape
    K2, N = w.shape
    assert K == K2
    tm = _pick_tile(M, tm)
    tn = _pick_tile(N, tn)
    tk = _pick_tile(K, tk)
    grid = (M // tm, N // tn, K // tk)
    return pl.pallas_call(
        _matmul_kernel,
        out_shape=jax.ShapeDtypeStruct((M, N), x.dtype),
        grid_spec=pltpu.PrefetchScalarGridSpec(
            num_scalar_prefetch=0,
            grid=grid,
            in_specs=[
                pl.BlockSpec((tm, tk), lambda i, j, k: (i, k)),
                pl.BlockSpec((tk, tn), lambda i, j, k: (k, j)),
            ],
            out_specs=pl.BlockSpec((tm, tn), lambda i, j, k: (i, j)),
            scratch_shapes=[pltpu.VMEM((tm, tn), jnp.float32)],
        ),
        compiler_params=pltpu.CompilerParams(
            dimension_semantics=("parallel", "parallel", "arbitrary"),
            vmem_limit_bytes=32 * 1024 * 1024,
        ),
    )(x, w)


# -----------------------------------------------------------------------------
# Fused attention core: per batch, all heads -> softmax(q k^T) v -> to_out (+bias).
# Writes one lane-dense (N, query_dim) slab per grid step.
# -----------------------------------------------------------------------------
def _attn_core(q, k, v, wo_ref, bo_ref, o_ref, *, heads, d, scale):
    # q: (N, inner), k/v: (M, inner), wo: (inner, qdim), bo: (1, qdim)
    N = q.shape[0]
    qdim = o_ref.shape[-1]

    qs = q.astype(jnp.float32) * scale          # fold scale into q once per step
    kf = k.astype(jnp.float32)
    vf = v.astype(jnp.float32)
    wo = wo_ref[...].astype(jnp.float32)

    # to_out bias folded into the accumulator initialization.
    acc = jnp.broadcast_to(bo_ref[...].astype(jnp.float32), (N, qdim))

    for h in range(heads):                      # static unroll over heads
        sl = slice(h * d, (h + 1) * d)
        qh, kh, vh = qs[:, sl], kf[:, sl], vf[:, sl]
        # q @ k^T without an explicit transpose: contract last dim vs last dim.
        sim = lax.dot_general(qh, kh, (((1,), (1,)), ((), ())),
                              preferred_element_type=jnp.float32)       # (N, M)
        sim = sim - jnp.max(sim, axis=-1, keepdims=True)
        p = jnp.exp(sim)
        p = p * pl.reciprocal(jnp.sum(p, axis=-1, keepdims=True), approx=True)
        # TODO(synk): optional `mask` argument and attention dropout of the reference
        #             forward are not implemented (dropout is identity at p=0.0 / eval).
        oh = jnp.dot(p, vh, preferred_element_type=jnp.float32)          # (N, d)
        # Fused output projection: accumulate this head's contribution to to_out.
        acc = acc + jnp.dot(oh, wo[sl, :], preferred_element_type=jnp.float32)

    o_ref[0] = acc.astype(o_ref.dtype)


def _attn_self_kernel(qkv_ref, wo_ref, bo_ref, o_ref, *, heads, d, inner, scale):
    t = qkv_ref[0]                               # (N, 3*inner): [q | k | v]
    _attn_core(t[:, :inner], t[:, inner:2 * inner], t[:, 2 * inner:],
               wo_ref, bo_ref, o_ref, heads=heads, d=d, scale=scale)


def _attn_cross_kernel(q_ref, kv_ref, wo_ref, bo_ref, o_ref, *, heads, d, inner, scale):
    q = q_ref[0]                                 # (N, inner)
    kv = kv_ref[0]                               # (M, 2*inner): [k | v]
    _attn_core(q, kv[:, :inner], kv[:, inner:],
               wo_ref, bo_ref, o_ref, heads=heads, d=d, scale=scale)


def _attention_self(qkv, wo_mat, bo2d, *, heads, d, inner, scale, qdim):
    B, N, _ = qkv.shape
    kern = functools.partial(_attn_self_kernel, heads=heads, d=d, inner=inner, scale=scale)
    return pl.pallas_call(
        kern,
        out_shape=jax.ShapeDtypeStruct((B, N, qdim), qkv.dtype),
        grid_spec=pltpu.PrefetchScalarGridSpec(
            num_scalar_prefetch=0,
            grid=(B,),
            in_specs=[
                pl.BlockSpec((1, N, 3 * inner), lambda b: (b, 0, 0)),
                pl.BlockSpec((inner, qdim), lambda b: (0, 0)),
                pl.BlockSpec((1, qdim), lambda b: (0, 0)),
            ],
            out_specs=pl.BlockSpec((1, N, qdim), lambda b: (b, 0, 0)),
        ),
        compiler_params=pltpu.CompilerParams(
            dimension_semantics=("parallel",),
            vmem_limit_bytes=32 * 1024 * 1024,
        ),
    )(qkv, wo_mat, bo2d)


def _attention_cross(q, kv, wo_mat, bo2d, *, heads, d, inner, scale, qdim):
    B, N, _ = q.shape
    M = kv.shape[1]
    kern = functools.partial(_attn_cross_kernel, heads=heads, d=d, inner=inner, scale=scale)
    return pl.pallas_call(
        kern,
        out_shape=jax.ShapeDtypeStruct((B, N, qdim), q.dtype),
        grid_spec=pltpu.PrefetchScalarGridSpec(
            num_scalar_prefetch=0,
            grid=(B,),
            in_specs=[
                pl.BlockSpec((1, N, inner), lambda b: (b, 0, 0)),
                pl.BlockSpec((1, M, 2 * inner), lambda b: (b, 0, 0)),
                pl.BlockSpec((inner, qdim), lambda b: (0, 0)),
                pl.BlockSpec((1, qdim), lambda b: (0, 0)),
            ],
            out_specs=pl.BlockSpec((1, N, qdim), lambda b: (b, 0, 0)),
        ),
        compiler_params=pltpu.CompilerParams(
            dimension_semantics=("parallel",),
            vmem_limit_bytes=32 * 1024 * 1024,
        ),
    )(q, kv, wo_mat, bo2d)


# -----------------------------------------------------------------------------
# PerceiverAttention forward
# -----------------------------------------------------------------------------
def perceiver_attention(x, params, *, heads, context=None):
    """
    x:       (B, N, query_dim)
    context: (B, M, context_dim) or None (defaults to x)
    params (PyTorch nn.Linear conventions):
      wq  : (inner_dim, query_dim)        to_q  (no bias)
      wkv : (2*inner_dim, context_dim)    to_kv (no bias)
      wo  : (query_dim, inner_dim)        to_out weight
      bo  : (query_dim,)                  to_out bias
    """
    B, N, qdim = x.shape
    wq, wkv, wo, bo = params["wq"], params["wkv"], params["wo"], params["bo"]
    inner = wq.shape[0]
    d = inner // heads
    scale = float(d) ** (-0.5)

    wo_mat = wo.T.astype(x.dtype)            # (inner, qdim)
    bo2d = bo.reshape(1, qdim).astype(x.dtype)

    if context is None:
        # Fused q/k/v projection: one matmul over [wq.T | wkv.T].
        w_fused = jnp.concatenate([wq.T, wkv.T], axis=1).astype(x.dtype)   # (qdim, 3*inner)
        qkv = _matmul(x.reshape(B * N, qdim), w_fused)                      # (B*N, 3*inner)
        qkv = qkv.reshape(B, N, 3 * inner)
        return _attention_self(qkv, wo_mat, bo2d, heads=heads, d=d,
                               inner=inner, scale=scale, qdim=qdim)
    else:
        Bc, M, cdim = context.shape
        q = _matmul(x.reshape(B * N, qdim), wq.T.astype(x.dtype)).reshape(B, N, inner)
        kv = _matmul(context.reshape(Bc * M, cdim),
                     wkv.T.astype(x.dtype)).reshape(Bc, M, 2 * inner)
        return _attention_cross(q, kv, wo_mat, bo2d, heads=heads, d=d,
                                inner=inner, scale=scale, qdim=qdim)


# -----------------------------------------------------------------------------
# Pure-JAX reference (sanity check in main)
# -----------------------------------------------------------------------------
def _reference(x, params, heads, context=None):
    B, N, qdim = x.shape
    ctx = x if context is None else context
    wq, wkv, wo, bo = params["wq"], params["wkv"], params["wo"], params["bo"]
    inner = wq.shape[0]
    d = inner // heads
    q = x @ wq.T
    kv = ctx @ wkv.T
    k, v = kv[..., :inner], kv[..., inner:]

    def split(t):
        b, n, _ = t.shape
        return t.reshape(b, n, heads, d).transpose(0, 2, 1, 3)

    qh, kh, vh = split(q), split(k), split(v)
    sim = jnp.einsum("bhid,bhjd->bhij", qh, kh) * (float(d) ** -0.5)
    p = jax.nn.softmax(sim, axis=-1)
    o = jnp.einsum("bhij,bhjd->bhid", p, vh)
    o = o.transpose(0, 2, 1, 3).reshape(B, N, inner)
    return o @ wo.T + bo


# -----------------------------------------------------------------------------
# Main: deterministic params + example inputs (self-attn and cross-attn paths)
# -----------------------------------------------------------------------------
if __name__ == "__main__":
    B, N, M = 2, 8, 16
    query_dim = 32
    heads = 4
    dim_head = 16
    inner_dim = heads * dim_head

    key = jax.random.PRNGKey(0)
    kx, kc, kq, kkv, kwo, kbo = jax.random.split(key, 6)

    x = jax.random.normal(kx, (B, N, query_dim), dtype=jnp.float32)
    ctx = jax.random.normal(kc, (B, M, query_dim), dtype=jnp.float32)

    def uinit(k, shape, fan_in):
        bound = 1.0 / (fan_in ** 0.5)
        return jax.random.uniform(k, shape, jnp.float32, -bound, bound)

    params = {
        "wq":  uinit(kq,  (inner_dim, query_dim), query_dim),
        "wkv": uinit(kkv, (2 * inner_dim, query_dim), query_dim),
        "wo":  uinit(kwo, (query_dim, inner_dim), inner_dim),
        "bo":  uinit(kbo, (query_dim,), inner_dim),
    }

    # Self-attention path (context=None).
    out = perceiver_attention(x, params, heads=heads, context=None)
    jax.block_until_ready(out)
    assert out.shape == (B, N, query_dim)
    ref = _reference(x, params, heads, context=None)
    assert jnp.allclose(out, ref, atol=2e-2, rtol=2e-2), "self-attn mismatch vs JAX reference"

    # Cross-attention path (explicit context).
    out_c = perceiver_attention(x, params, heads=heads, context=ctx)
    jax.block_until_ready(out_c)
    assert out_c.shape == (B, N, query_dim)
    ref_c = _reference(x, params, heads, context=ctx)
    assert jnp.allclose(out_c, ref_c, atol=2e-2, rtol=2e-2), "cross-attn mismatch vs JAX reference"

    print("KERNEL_OK")
</pallas_src>

<mosaic_0001>
module attributes {stable_mosaic.version = 11 : i64} {
  func.func @_matmul_kernel(%arg0: i32, %arg1: i32, %arg2: i32, %arg3: memref<16x32xf32, #tpu.memory_space<vmem>>, %arg4: memref<32x192xf32, #tpu.memory_space<vmem>>, %arg5: memref<16x192xf32, #tpu.memory_space<vmem>>, %arg6: memref<16x192xf32, #tpu.memory_space<vmem>>) attributes {dimension_semantics = [#tpu.dimension_semantics<parallel>, #tpu.dimension_semantics<parallel>, #tpu.dimension_semantics<arbitrary>], iteration_bounds = array<i64: 1, 1, 1>, scalar_prefetch = 0 : i64, scratch_operands = 1 : i64, tpu.core_type = #tpu.core_type<tc>, window_params = [{transform_indices = @transform_0, window_bounds = array<i64: 16, 32>}, {transform_indices = @transform_1, window_bounds = array<i64: 32, 192>}, {transform_indices = @transform_2, window_bounds = array<i64: 16, 192>}]} {
    %c0_i32 = arith.constant 0 : i32
    %0 = arith.cmpi eq, %arg2, %c0_i32 : i32
    %1 = arith.extui %0 : i1 to i32
    %c0_i32_0 = arith.constant 0 : i32
    %2 = arith.cmpi ne, %1, %c0_i32_0 : i32
    scf.if %2 {
      %cst_10 = arith.constant 0.000000e+00 : f32
      %12 = vector.broadcast %cst_10 : f32 to vector<16x192xf32>
      %c0_11 = arith.constant 0 : index
      %c0_12 = arith.constant 0 : index
      %13 = vector.load %arg6[%c0_11, %c0_12] : memref<16x192xf32, #tpu.memory_space<vmem>>, vector<16x192xf32>
      tpu.vector_store %arg6[%c0_11, %c0_12], %12 {strides = array<i32>} : memref<16x192xf32, #tpu.memory_space<vmem>>, vector<16x192xf32>,
    } else {
    }
    %c0 = arith.constant 0 : index
    %c0_1 = arith.constant 0 : index
    %3 = vector.load %arg6[%c0, %c0_1] : memref<16x192xf32, #tpu.memory_space<vmem>>, vector<16x192xf32>
    %c0_2 = arith.constant 0 : index
    %c0_3 = arith.constant 0 : index
    %4 = vector.load %arg3[%c0_2, %c0_3] : memref<16x32xf32, #tpu.memory_space<vmem>>, vector<16x32xf32>
    %c0_4 = arith.constant 0 : index
    %c0_5 = arith.constant 0 : index
    %5 = vector.load %arg4[%c0_4, %c0_5] : memref<32x192xf32, #tpu.memory_space<vmem>>, vector<32x192xf32>
    %cst = arith.constant dense<0.000000e+00> : vector<16x192xf32>
    %6 = tpu.matmul %4, %5, %cst {dimension_numbers = #tpu.dot_dimension_numbers<[1], [0], [0], [1], [0, 0, 1, 1], [], []>} : vector<16x32xf32>, vector<32x192xf32>, vector<16x192xf32> -> vector<16x192xf32>
    %7 = arith.addf %3, %6 : vector<16x192xf32>
    %c0_6 = arith.constant 0 : index
    %c0_7 = arith.constant 0 : index
    %8 = vector.load %arg6[%c0_6, %c0_7] : memref<16x192xf32, #tpu.memory_space<vmem>>, vector<16x192xf32>
    tpu.vector_store %arg6[%c0_6, %c0_7], %7 {strides = array<i32>} : memref<16x192xf32, #tpu.memory_space<vmem>>, vector<16x192xf32>,
    %c0_i32_8 = arith.constant 0 : i32
    %9 = arith.cmpi eq, %arg2, %c0_i32_8 : i32
    %10 = arith.extui %9 : i1 to i32
    %c0_i32_9 = arith.constant 0 : i32
    %11 = arith.cmpi ne, %10, %c0_i32_9 : i32
    scf.if %11 {
      %c0_10 = arith.constant 0 : index
      %c0_11 = arith.constant 0 : index
      %12 = vector.load %arg6[%c0_10, %c0_11] : memref<16x192xf32, #tpu.memory_space<vmem>>, vector<16x192xf32>
      %c0_12 = arith.constant 0 : index
      %c0_13 = arith.constant 0 : index
      %13 = vector.load %arg5[%c0_12, %c0_13] : memref<16x192xf32, #tpu.memory_space<vmem>>, vector<16x192xf32>
      tpu.vector_store %arg5[%c0_12, %c0_13], %12 {strides = array<i32>} : memref<16x192xf32, #tpu.memory_space<vmem>>, vector<16x192xf32>,
    } else {
    }
    return
  }
  func.func @transform_0(%arg0: i32, %arg1: i32, %arg2: i32) -> (i32, i32) {
    %c0_i32 = arith.constant 0 : i32
    return %arg0, %arg2 : i32, i32
  }
  func.func @transform_1(%arg0: i32, %arg1: i32, %arg2: i32) -> (i32, i32) {
    %c0_i32 = arith.constant 0 : i32
    return %arg2, %arg1 : i32, i32
  }
  func.func @transform_2(%arg0: i32, %arg1: i32, %arg2: i32) -> (i32, i32) {
    %c0_i32 = arith.constant 0 : i32
    return %arg0, %arg1 : i32, i32
  }
}

</mosaic_0001>

<llo_original>
// kernel: tpu_custom_call.1
$region0: #{tpu_custom_call.1}
  #allocation0 [shape = 'u32[]', space=smem, size = 0x4, offset = 0x4, fixed_abs, tag = 'smem constant byte address 0x4 - core index']
  #allocation1 [shape = 'u32[144,128]{1,0:T(1,128)}', space=vmem, size = 0x12000, scoped, tag = 'internal scratch']
  #allocation2 [shape = 'f32[16,192]{1,0:T(8,128)}', space=vmem, size = 0x4000, scoped, tag = 'scratch operand']
  %s0 = inlined_call_operand.hbm [shape: f32[16,32], index: 0, kind: input, shape index: {}]
  %s1 = inlined_call_operand.hbm [shape: f32[32,192], index: 1, kind: input, shape index: {}]
  %s2 = inlined_call_operand.hbm [shape: f32[16,192], index: 2, kind: output, shape index: {}]
  %s3 = sld [smem:[#allocation0]]
  $region34: #{tpu_custom_call.1} parent=0
    _
  %s5 = ssub.s32 1, %s3
  %s6 = scalar_select 0, %s5, %s3
  $region1: #{tpu_custom_call.1} parent=0
    #allocation3 [shape = 'u8[8192]{0}', space=vmem, size = 0x2000, scoped, tag = 'input window, operand 0, single buffered']
    #allocation4 [shape = 's32[1]{0}', space=sflag, size = 0x4, scoped, tag = 'scoped memory for tpu_custom_call.1']
    #allocation5 [shape = 's32[1]{0}', space=sflag, size = 0x4, scoped, tag = 'scoped memory for tpu_custom_call.1']
    #allocation6 [shape = 'u8[32768]{0}', space=vmem, size = 0x8000, scoped, tag = 'input window, operand 1, single buffered']
    #allocation7 [shape = 's32[1]{0}', space=sflag, size = 0x4, scoped, tag = 'scoped memory for tpu_custom_call.1']
    #allocation8 [shape = 'u8[16384]{0}', space=vmem, size = 0x4000, scoped, tag = 'output window, operand 0, single buffered']
    %7 = vsyncpa [#allocation4], 0
    %8 = vsyncpa [#allocation7], 0
    %9 = vsyncpa [#allocation5], 0
    // Predicated region
    $region2: #{tpu_custom_call.1} parent=1 // pred_check
      _
    $region3: #{tpu_custom_call.1} parent=1 // pred_check_branch
      %11 = sbr.rel (0) target = $region5
    $region4: #{tpu_custom_call.1} parent=1 // pred_region
      %s13 = ssub.s32 256, 256
      %14 = vsyncadd [#allocation4], %s13
      %s15 = sshll.u32 [#allocation3], 4
      %s16 = int_to_ptr.vmem [resolvable:$true] %s15
      %21 = dma.hbm_to_vmem [thread:$0]  %s0, 256, %s16, [#allocation4], 128, 128, 8
    $region5: #{tpu_custom_call.1} parent=1 // pred_fallthru
      _
    // Predicated region
    $region6: #{tpu_custom_call.1} parent=1 // pred_check
      _
    $region7: #{tpu_custom_call.1} parent=1 // pred_check_branch
      %23 = sbr.rel (0) target = $region9
    $region8: #{tpu_custom_call.1} parent=1 // pred_region
      %s25 = ssub.s32 1024, 1024
      %26 = vsyncadd [#allocation7], %s25
      %s27 = sshll.u32 [#allocation6], 4
      %s28 = int_to_ptr.vmem [resolvable:$true] %s27
      %33 = dma.hbm_to_vmem [thread:$0]  %s1, 1024, %s28, [#allocation7], 256, 256, 16
    $region9: #{tpu_custom_call.1} parent=1 // pred_fallthru
      _
    // Predicated region
    $region10: #{tpu_custom_call.1} parent=1 // pred_check
      _
    $region11: #{tpu_custom_call.1} parent=1 // pred_check_branch
      %35 = sbr.rel (0) target = $region13
    $region12: #{tpu_custom_call.1} parent=1 // pred_region
      %36 = dma.done [#allocation4], 256
    $region13: #{tpu_custom_call.1} parent=1 // pred_fallthru
      _
    // Predicated region
    $region14: #{tpu_custom_call.1} parent=1 // pred_check
      _
    $region15: #{tpu_custom_call.1} parent=1 // pred_check_branch
      %38 = sbr.rel (0) target = $region17
    $region16: #{tpu_custom_call.1} parent=1 // pred_region
      %39 = dma.done [#allocation7], 1024
    $region17: #{tpu_custom_call.1} parent=1 // pred_fallthru
      _
    %p40 = scmp.eq.s32.totalorder 0, 0
    // Predicated region
    $region18: #{tpu_custom_call.1} parent=1 // pred_check
      %p41 = pneg %p40
    $region19: #{tpu_custom_call.1} parent=1 // pred_check_branch
      %43 = sbr.rel (%p41) target = $region21
    $region20: #{tpu_custom_call.1} parent=1 // pred_region
      %44 = vst [vmem:[#allocation2] sm:$0xff] 0.0
      %vm45 = vcmask 523264
      %46 = vst.msk [vmem:[#allocation2 + $0x8] sm:$0xff] %vm45, 0.0
      %47 = vst [vmem:[#allocation2 + $0x10] sm:$0xff] 0.0
      %48 = vst.msk [vmem:[#allocation2 + $0x18] sm:$0xff] %vm45, 0.0
    $region21: #{tpu_custom_call.1} parent=1 // pred_fallthru
      _
    %v49 = vld [vmem:[#allocation2] sm:$0xff]
    %v50 = vld [vmem:[#allocation2 + $0x8] sm:$0xff]
    %v51 = vld [vmem:[#allocation2 + $0x10] sm:$0xff]
    %v52 = vld [vmem:[#allocation2 + $0x18] sm:$0xff]
    %v53 = vld [vmem:[#allocation3] sm:$0xff]
    %v54 = vld [vmem:[#allocation3 + $0x8] sm:$0xff]
    %v55 = vld [vmem:[#allocation6] sm:$0xff]
    %v56 = vld [vmem:[#allocation6 + $0x8] sm:$0xff]
    %v57 = vld [vmem:[#allocation6 + $0x10] sm:$0xff]
    %v58 = vld [vmem:[#allocation6 + $0x18] sm:$0xff]
    %v59 = vld [vmem:[#allocation6 + $0x20] sm:$0xff]
    %v60 = vld [vmem:[#allocation6 + $0x28] sm:$0xff]
    %v61 = vld [vmem:[#allocation6 + $0x30] sm:$0xff]
    %v62 = vld [vmem:[#allocation6 + $0x38] sm:$0xff]
    %vm63 = vcmask 261120
    %v65 = vsel %vm63, %v53, 0
    %v68 = vsel %vm63, %v54, 0
    %70 = vmatprep.subr.mxu0 %v56
    %71 = vmatpush1.msra.mxu0 %v55
    %72 = vmatprep.subr.mxu0 %v58
    %73 = vmatpush1.msra.mxu0 %v57
    %74 = vmatprep.subr.mxu0 %v60
    %75 = vmatpush1.msra.mxu0 %v59
    %76 = vmatprep.subr.mxu0 %v62
    %77 = vmatpush1.msra.mxu0 %v61
    %78 = vmatprep.subr.mxu0 0.0
    %79 = vmatpush1.msra.mxu0 0.0
    %80 = vmatprep.subr.mxu0 0.0
    %81 = vmatpush1.msra.mxu0 0.0
    %82 = vmatprep.subr.mxu0 0.0
    %83 = vmatpush1.msra.mxu0 0.0
    %84 = vmatprep.subr.mxu0 0.0
    %85 = vmatpush1.msra.mxu0 0.0
    %86 = vmatprep.subr.mxu0 0.0
    %87 = vmatpush1.msra.mxu0 0.0
    %88 = vmatprep.subr.mxu0 0.0
    %89 = vmatpush1.msra.mxu0 0.0
    %90 = vmatprep.subr.mxu0 0.0
    %91 = vmatpush1.msra.mxu0 0.0
    %92 = vmatprep.subr.mxu0 0.0
    %93 = vmatpush1.msra.mxu0 0.0
    %94 = vmatprep.subr.mxu0 0.0
    %95 = vmatpush1.msra.mxu0 0.0
    %96 = vmatprep.subr.mxu0 0.0
    %97 = vmatpush1.msra.mxu0 0.0
    %98 = vmatprep.subr.mxu0 0.0
    %99 = vmatpush1.msra.mxu0 0.0
    %100 = vmatprep.subr.mxu0 0.0
    %101 = vmatpush1.msra.mxu0 0.0
    %102 = vmatprep.subr.mxu0 0.0
    %103 = vmatpush1.msra.mxu0 0.0
    %104 = vmatprep.subr.mxu0 0.0
    %105 = vmatpush1.msra.mxu0 0.0
    %106 = vmatprep.subr.mxu0 0.0
    %107 = vmatpush1.msra.mxu0 0.0
    %108 = vmatprep.subr.mxu0 0.0
    %109 = vmatpush1.msra.mxu0 0.0
    %110 = vmatprep.subr.mxu0 0.0
    %111 = vmatpush1.msra.mxu0 0.0
    %112 = vmatprep.subr.mxu0 0.0
    %113 = vmatpush1.msra.mxu0 0.0
    %114 = vmatprep.subr.mxu0 0.0
    %115 = vmatpush1.msra.mxu0 0.0
    %116 = vmatprep.subr.mxu0 0.0
    %117 = vmatpush1.msra.mxu0 0.0
    %118 = vmatprep.subr.mxu0 0.0
    %119 = vmatpush1.msra.mxu0 0.0
    %120 = vmatprep.subr.mxu0 0.0
    %121 = vmatpush1.msra.mxu0 0.0
    %122 = vmatprep.subr.mxu0 0.0
    %123 = vmatpush1.msra.mxu0 0.0
    %124 = vmatprep.subr.mxu0 0.0
    %125 = vmatpush1.msra.mxu0 0.0
    %126 = vmatprep.subr.mxu0 0.0
    %127 = vmatpush1.msra.mxu0 0.0
    %128 = vmatprep.subr.mxu0 0.0
    %129 = vmatpush1.msra.mxu0 0.0
    %130 = vmatprep.subr.mxu0 0.0
    %131 = vmatpush1.msra.mxu0 0.0
    %132 = vmatprep.subr.mxu0 0.0
    %133 = vmatpush1.msra.mxu0 0.0
    %134 = vmatprep.mubr.f32.mxu0 0.0
    %135 = vmatmul.mubr.f32.gmra.mrb[0].mxu0 %v65
    %v136 = vpop.f32.mrb[0].mxu0
    %v137 = vadd.f32 0.0, %v136
    %v138 = vpop.f32.mrb[0].mxu0
    %v139 = vadd.f32 0.0, %v138
    %140 = vmatprep.mubr.f32.mxu0 0.0
    %141 = vmatmul.mubr.f32.gmra.mrb[0].mxu0 %v68
    %v142 = vpop.f32.mrb[0].mxu0
    %v143 = vadd.f32 0.0, %v142
    %v144 = vpop.f32.mrb[0].mxu0
    %v145 = vadd.f32 0.0, %v144
    %146 = vdwg.mxu0
    %v147 = vadd.f32 %v49, %v137
    %v148 = vadd.f32 %v50, %v139
    %v149 = vadd.f32 %v51, %v143
    %v150 = vadd.f32 %v52, %v145
    %151 = vst [vmem:[#allocation2] sm:$0xff] %v147
    %vm152 = vcmask 523264
    %153 = vst.msk [vmem:[#allocation2 + $0x8] sm:$0xff] %vm152, %v148
    %154 = vst [vmem:[#allocation2 + $0x10] sm:$0xff] %v149
    %155 = vst.msk [vmem:[#allocation2 + $0x18] sm:$0xff] %vm152, %v150
    // Predicated region
    $region22: #{tpu_custom_call.1} parent=1 // pred_check
      %p156 = pneg %p40
    $region23: #{tpu_custom_call.1} parent=1 // pred_check_branch
      %158 = sbr.rel (%p156) target = $region25
    $region24: #{tpu_custom_call.1} parent=1 // pred_region
      %v159 = vld [vmem:[#allocation2] sm:$0xff]
      %v160 = vld [vmem:[#allocation2 + $0x8] sm:$0xff]
      %v161 = vld [vmem:[#allocation2 + $0x10] sm:$0xff]
      %v162 = vld [vmem:[#allocation2 + $0x18] sm:$0xff]
      %163 = vst [vmem:[#allocation8] sm:$0xff] %v159
      %164 = vst.msk [vmem:[#allocation8 + $0x8] sm:$0xff] %vm152, %v160
      %165 = vst [vmem:[#allocation8 + $0x10] sm:$0xff] %v161
      %166 = vst.msk [vmem:[#allocation8 + $0x18] sm:$0xff] %vm152, %v162
    $region25: #{tpu_custom_call.1} parent=1 // pred_fallthru
      _
    // Predicated region
    $region26: #{tpu_custom_call.1} parent=1 // pred_check
      _
    $region27: #{tpu_custom_call.1} parent=1 // pred_check_branch
      %168 = sbr.rel (0) target = $region29
    $region28: #{tpu_custom_call.1} parent=1 // pred_region
      %s170 = ssub.s32 512, 512
      %171 = vsyncadd [#allocation5], %s170
      %s172 = sshll.u32 [#allocation8], 4
      %s173 = int_to_ptr.vmem [resolvable:$true] %s172
      %178 = dma.vmem_to_hbm [thread:$0]  %s173, 512, %s2, [#allocation5], 256, 256, 16
    $region29: #{tpu_custom_call.1} parent=1 // pred_fallthru
      _
    // Predicated region
    $region30: #{tpu_custom_call.1} parent=1 // pred_check
      _
    $region31: #{tpu_custom_call.1} parent=1 // pred_check_branch
      %180 = sbr.rel (0) target = $region33
    $region32: #{tpu_custom_call.1} parent=1 // pred_region
      %181 = dma.done [#allocation5], 512
    $region33: #{tpu_custom_call.1} parent=1 // pred_fallthru
      _
    %182 = vsyncpa [#allocation4], 1
    %183 = vsyncpa [#allocation7], 1
    %184 = vsyncpa [#allocation5], 1

</llo_original>
